<compile_context>
chip_gen: v5e
topology: v5e:2x2
jax: 0.10.0
libtpu: 0.0.40
codegen_flags: <defaults>
</compile_context>

<pallas_src>
import functools

import jax
import jax.numpy as jnp
from jax.experimental import pallas as pl
from jax.experimental.pallas import tpu as pltpu


def _tile_forward(x, w1, b1, w2_row, b2):
    """One batch tile of the MLP.

    x: (TB, D), w1: (D, 3), b1: (1, 3), w2_row: (1, 3), b2: (1, 1).
    First matmul uses the MXU; the 3->1 contraction stays on the VPU.
    """
    h = jax.nn.sigmoid(
        jnp.dot(x, w1, preferred_element_type=jnp.float32) + b1)
    z = jnp.sum(h * w2_row, axis=-1, keepdims=True) + b2
    return jax.nn.sigmoid(z)


def mlp_kernel(x_ref, w1_ref, b1_ref, w2_ref, b2_ref, o_ref):
    # NOTE: (TB, 1) output is lane-sparse, but it matches the module's
    # (batch, 1) output contract; the fused-loss path below never stores it.
    o_ref[...] = _tile_forward(
        x_ref[...], w1_ref[...], b1_ref[...], w2_ref[...], b2_ref[...])


def mlp_mse_kernel(x_ref, w1_ref, b1_ref, w2_ref, b2_ref, y_ref,
                   loss_ref, acc_ref, *, true_batch, tile_rows):
    """Fused forward + MSE: accumulates sum((pred - y)^2) over batch tiles."""
    i = pl.program_id(0)

    @pl.when(i == 0)
    def _init():
        acc_ref[0, 0] = jnp.float32(0.0)

    pred = _tile_forward(
        x_ref[...], w1_ref[...], b1_ref[...], w2_ref[...], b2_ref[...])

    # Mask out rows that only exist because batch was padded to a tile multiple.
    row = i * tile_rows + jax.lax.broadcasted_iota(jnp.int32, pred.shape, 0)
    d = jnp.where(row < true_batch, pred - y_ref[...], jnp.float32(0.0))
    acc_ref[0, 0] += jnp.sum(d * d)

    @pl.when(i == pl.num_programs(0) - 1)
    def _finalize():
        loss_ref[0, 0] = acc_ref[0, 0] / jnp.float32(true_batch)


def _round_up(a, b):
    return ((a + b - 1) // b) * b


def net_forward(x, params, y=None, *, block_rows=512):
    """Pallas forward pass. With y: scalar MSE loss (single fused kernel).
    Without y: y_pred of shape (batch, 1)."""
    w1, b1, w2_row, b2 = params
    B, D = x.shape

    # Tile the batch in TB-row blocks (multiple of 8 sublanes); pad batch up.
    TB = block_rows if B > block_rows else _round_up(max(B, 8), 8)
    Bp = _round_up(B, TB)
    if Bp != B:
        x = jnp.pad(x, ((0, Bp - B), (0, 0)))
    grid = (Bp // TB,)

    x_spec = pl.BlockSpec((TB, D), lambda i: (i, 0))
    w1_spec = pl.BlockSpec((D, 3), lambda i: (0, 0))
    b1_spec = pl.BlockSpec((1, 3), lambda i: (0, 0))
    w2_spec = pl.BlockSpec((1, 3), lambda i: (0, 0))
    b2_spec = pl.BlockSpec((1, 1), lambda i: (0, 0))

    if y is None:
        out = pl.pallas_call(
            mlp_kernel,
            grid=grid,
            in_specs=[x_spec, w1_spec, b1_spec, w2_spec, b2_spec],
            out_specs=pl.BlockSpec((TB, 1), lambda i: (i, 0)),
            out_shape=jax.ShapeDtypeStruct((Bp, 1), jnp.float32),
            compiler_params=pltpu.CompilerParams(
                dimension_semantics=("parallel",)),
        )(x, w1, b1, w2_row, b2)
        return out[:B]

    # Fused forward + loss: one launch, y_pred never written to HBM.
    y_p = jnp.pad(y, ((0, Bp - B), (0, 0))) if Bp != B else y
    kernel = functools.partial(mlp_mse_kernel, true_batch=B, tile_rows=TB)
    loss = pl.pallas_call(
        kernel,
        grid=grid,
        in_specs=[x_spec, w1_spec, b1_spec, w2_spec, b2_spec,
                  pl.BlockSpec((TB, 1), lambda i: (i, 0))],
        out_specs=pl.BlockSpec((1, 1), lambda i: (0, 0),
                               memory_space=pltpu.SMEM),
        out_shape=jax.ShapeDtypeStruct((1, 1), jnp.float32),
        scratch_shapes=[pltpu.SMEM((1, 1), jnp.float32)],
        compiler_params=pltpu.CompilerParams(
            dimension_semantics=("arbitrary",)),  # grid axis is a reduction
    )(x, w1, b1, w2_row, b2, y_p)
    return loss[0, 0]


def init_params(key, input_size):
    # Deterministic init matching nn.Linear shapes:
    #   linear1: weight (3, input_size), bias (3,)
    #   linear2: weight (1, 3),          bias (1,)
    k1, k2, k3, k4 = jax.random.split(key, 4)
    bound1 = 1.0 / jnp.sqrt(input_size)
    w1_t = jax.random.uniform(k1, (input_size, 3), jnp.float32, -bound1, bound1)
    b1 = jax.random.uniform(k2, (1, 3), jnp.float32, -bound1, bound1)
    bound2 = 1.0 / jnp.sqrt(3.0)
    w2_row = jax.random.uniform(k3, (1, 3), jnp.float32, -bound2, bound2)
    b2 = jax.random.uniform(k4, (1, 1), jnp.float32, -bound2, bound2)
    return (w1_t, b1, w2_row, b2)


def _reference(x, params, y=None):
    w1, b1, w2_row, b2 = params
    h = jax.nn.sigmoid(x @ w1 + b1)
    pred = jax.nn.sigmoid(jnp.sum(h * w2_row, axis=-1, keepdims=True) + b2)
    if y is None:
        return pred
    return jnp.mean((pred - y) ** 2)


if __name__ == "__main__":
    key = jax.random.PRNGKey(0)
    kx, ky, kp, kx2, ky2 = jax.random.split(key, 5)

    input_size = 32
    params = init_params(kp, input_size)

    # --- case 1: tile-aligned batch ---
    batch = 8
    x = jax.random.normal(kx, (batch, input_size), jnp.float32)
    y = jax.random.uniform(ky, (batch, 1), jnp.float32)

    y_pred = net_forward(x, params)
    jax.block_until_ready(y_pred)
    loss = net_forward(x, params, y)
    jax.block_until_ready(loss)

    assert jnp.allclose(y_pred, _reference(x, params), atol=1e-5), "y_pred mismatch"
    assert jnp.allclose(loss, _reference(x, params, y), atol=1e-5), "loss mismatch"

    # --- case 2: non-aligned batch (exercises padding + loss masking) ---
    batch2 = 20
    x2 = jax.random.normal(kx2, (batch2, input_size), jnp.float32)
    y2 = jax.random.uniform(ky2, (batch2, 1), jnp.float32)

    y_pred2 = net_forward(x2, params)
    jax.block_until_ready(y_pred2)
    loss2 = net_forward(x2, params, y2)
    jax.block_until_ready(loss2)

    assert y_pred2.shape == (batch2, 1)
    assert jnp.allclose(y_pred2, _reference(x2, params), atol=1e-5), "y_pred2 mismatch"
    assert jnp.allclose(loss2, _reference(x2, params, y2), atol=1e-5), "loss2 mismatch"

    print("KERNEL_OK")
</pallas_src>

<mosaic_0001>
module attributes {stable_mosaic.version = 11 : i64} {
  func.func @mlp_kernel(%arg0: i32, %arg1: memref<8x32xf32, #tpu.memory_space<vmem>>, %arg2: memref<32x3xf32, #tpu.memory_space<vmem>>, %arg3: memref<1x3xf32, #tpu.memory_space<vmem>>, %arg4: memref<1x3xf32, #tpu.memory_space<vmem>>, %arg5: memref<1x1xf32, #tpu.memory_space<vmem>>, %arg6: memref<8x1xf32, #tpu.memory_space<vmem>>) attributes {dimension_semantics = [#tpu.dimension_semantics<parallel>], iteration_bounds = array<i64: 1>, scalar_prefetch = 0 : i64, scratch_operands = 0 : i64, tpu.core_type = #tpu.core_type<tc>, window_params = [{transform_indices = @transform_0, window_bounds = array<i64: 8, 32>}, {pipeline_mode = #tpu.pipeline_mode<synchronous>, transform_indices = @transform_1, window_bounds = array<i64: 32, 3>}, {pipeline_mode = #tpu.pipeline_mode<synchronous>, transform_indices = @transform_2, window_bounds = array<i64: 1, 3>}, {pipeline_mode = #tpu.pipeline_mode<synchronous>, transform_indices = @transform_3, window_bounds = array<i64: 1, 3>}, {pipeline_mode = #tpu.pipeline_mode<synchronous>, transform_indices = @transform_4, window_bounds = array<i64: 1, 1>}, {transform_indices = @transform_5, window_bounds = array<i64: 8, 1>}]} {
    %c0 = arith.constant 0 : index
    %c0_0 = arith.constant 0 : index
    %0 = vector.load %arg1[%c0, %c0_0] : memref<8x32xf32, #tpu.memory_space<vmem>>, vector<8x32xf32>
    %c0_1 = arith.constant 0 : index
    %c0_2 = arith.constant 0 : index
    %1 = vector.load %arg2[%c0_1, %c0_2] : memref<32x3xf32, #tpu.memory_space<vmem>>, vector<32x3xf32>
    %c0_3 = arith.constant 0 : index
    %c0_4 = arith.constant 0 : index
    %2 = vector.load %arg3[%c0_3, %c0_4] : memref<1x3xf32, #tpu.memory_space<vmem>>, vector<1x3xf32>
    %c0_5 = arith.constant 0 : index
    %c0_6 = arith.constant 0 : index
    %3 = vector.load %arg4[%c0_5, %c0_6] : memref<1x3xf32, #tpu.memory_space<vmem>>, vector<1x3xf32>
    %c0_7 = arith.constant 0 : index
    %c0_8 = arith.constant 0 : index
    %4 = vector.load %arg5[%c0_7, %c0_8] : memref<1x1xf32, #tpu.memory_space<vmem>>, vector<1x1xf32>
    %cst = arith.constant dense<0.000000e+00> : vector<8x3xf32>
    %5 = tpu.matmul %0, %1, %cst {dimension_numbers = #tpu.dot_dimension_numbers<[1], [0], [0], [1], [0, 0, 1, 1], [], []>} : vector<8x32xf32>, vector<32x3xf32>, vector<8x3xf32> -> vector<8x3xf32>
    %6 = vector.broadcast %2 : vector<1x3xf32> to vector<8x3xf32>
    %7 = arith.addf %5, %6 : vector<8x3xf32>
    %8 = arith.negf %7 : vector<8x3xf32>
    %9 = math.exp %8 : vector<8x3xf32>
    %cst_9 = arith.constant 1.000000e+00 : f32
    %10 = vector.broadcast %cst_9 : f32 to vector<8x3xf32>
    %11 = arith.addf %10, %9 : vector<8x3xf32>
    %12 = arith.divf %10, %11 : vector<8x3xf32>
    %13 = vector.broadcast %3 : vector<1x3xf32> to vector<8x3xf32>
    %14 = arith.mulf %12, %13 : vector<8x3xf32>
    %cst_10 = arith.constant dense<0.000000e+00> : vector<8xf32>
    %15 = vector.multi_reduction <add>, %14, %cst_10 [1] : vector<8x3xf32> to vector<8xf32>
    %16 = vector.shape_cast %15 : vector<8xf32> to vector<8x1xf32>
    %17 = vector.broadcast %4 : vector<1x1xf32> to vector<8x1xf32>
    %18 = arith.addf %16, %17 : vector<8x1xf32>
    %19 = arith.negf %18 : vector<8x1xf32>
    %20 = math.exp %19 : vector<8x1xf32>
    %cst_11 = arith.constant 1.000000e+00 : f32
    %21 = vector.broadcast %cst_11 : f32 to vector<8x1xf32>
    %22 = arith.addf %21, %20 : vector<8x1xf32>
    %23 = arith.divf %21, %22 : vector<8x1xf32>
    %c0_12 = arith.constant 0 : index
    %c0_13 = arith.constant 0 : index
    %24 = vector.load %arg6[%c0_12, %c0_13] : memref<8x1xf32, #tpu.memory_space<vmem>>, vector<8x1xf32>
    tpu.vector_store %arg6[%c0_12, %c0_13], %23 {strides = array<i32>} : memref<8x1xf32, #tpu.memory_space<vmem>>, vector<8x1xf32>,
    return
  }
  func.func @transform_0(%arg0: i32) -> (i32, i32) {
    %c0_i32 = arith.constant 0 : i32
    %c0_i32_0 = arith.constant 0 : i32
    return %arg0, %c0_i32 : i32, i32
  }
  func.func @transform_1(%arg0: i32) -> (i32, i32) {
    %c0_i32 = arith.constant 0 : i32
    %c0_i32_0 = arith.constant 0 : i32
    %c0_i32_1 = arith.constant 0 : i32
    return %c0_i32, %c0_i32_0 : i32, i32
  }
  func.func @transform_2(%arg0: i32) -> (i32, i32) {
    %c0_i32 = arith.constant 0 : i32
    %c0_i32_0 = arith.constant 0 : i32
    %c0_i32_1 = arith.constant 0 : i32
    return %c0_i32, %c0_i32_0 : i32, i32
  }
  func.func @transform_3(%arg0: i32) -> (i32, i32) {
    %c0_i32 = arith.constant 0 : i32
    %c0_i32_0 = arith.constant 0 : i32
    %c0_i32_1 = arith.constant 0 : i32
    return %c0_i32, %c0_i32_0 : i32, i32
  }
  func.func @transform_4(%arg0: i32) -> (i32, i32) {
    %c0_i32 = arith.constant 0 : i32
    %c0_i32_0 = arith.constant 0 : i32
    %c0_i32_1 = arith.constant 0 : i32
    return %c0_i32, %c0_i32_0 : i32, i32
  }
  func.func @transform_5(%arg0: i32) -> (i32, i32) {
    %c0_i32 = arith.constant 0 : i32
    %c0_i32_0 = arith.constant 0 : i32
    return %arg0, %c0_i32 : i32, i32
  }
}

</mosaic_0001>

<llo_original>
// kernel: tpu_custom_call.1
$region0: #{tpu_custom_call.1}
  #allocation0 [shape = 'u32[]', space=smem, size = 0x4, offset = 0x4, fixed_abs, tag = 'smem constant byte address 0x4 - core index']
  #allocation1 [shape = 'u32[72,128]{1,0:T(1,128)}', space=vmem, size = 0x9000, scoped, tag = 'internal scratch']
  #allocation2 [shape = 'f32[1,1]{1,0:T(1,128)S(1)}', space=vmem, size = 0x200, scoped, tag = 'scoped memory for tpu_custom_call.1']
  %s0 = inlined_call_operand.vmem [shape: f32[8,32], index: 0, kind: input, shape index: {}]
  %s1 = inlined_call_operand.vmem [shape: f32[32,3], index: 1, kind: input, shape index: {}]
  %s2 = inlined_call_operand.vmem [shape: f32[1,3], index: 2, kind: input, shape index: {}]
  %s3 = inlined_call_operand.vmem [shape: f32[1,3], index: 3, kind: input, shape index: {}]
  %s4 = inlined_call_operand.<no memory space> [shape: f32[1,1], index: 4, kind: input, shape index: {}]
  %s5 = inlined_call_operand.vmem [shape: f32[8,1], index: 5, kind: output, shape index: {}]
  %s6 = sld [smem:[#allocation0]]
  $region30: #{tpu_custom_call.1} parent=0
    _
  %s8 = ssub.s32 1, %s6
  %s9 = scalar_select 0, %s8, %s6
  %v10 = vstv %s4
  %11 = vst [vmem:[#allocation2] sm:$0x1] %v10
  // Predicated region
  $region2: #{tpu_custom_call.1} parent=0 // pred_check
    _
  $region3: #{tpu_custom_call.1} parent=0 // pred_check_branch
    %13 = sbr.rel (0) target = $region5
  $region4: #{tpu_custom_call.1} parent=0 // pred_region
    _
  $region5: #{tpu_custom_call.1} parent=0 // pred_fallthru
    _
  // Predicated region
  $region6: #{tpu_custom_call.1} parent=0 // pred_check
    _
  $region7: #{tpu_custom_call.1} parent=0 // pred_check_branch
    %15 = sbr.rel (0) target = $region9
  $region8: #{tpu_custom_call.1} parent=0 // pred_region
    _
  $region9: #{tpu_custom_call.1} parent=0 // pred_fallthru
    _
  // Predicated region
  $region10: #{tpu_custom_call.1} parent=0 // pred_check
    _
  $region11: #{tpu_custom_call.1} parent=0 // pred_check_branch
    %17 = sbr.rel (0) target = $region13
  $region12: #{tpu_custom_call.1} parent=0 // pred_region
    _
  $region13: #{tpu_custom_call.1} parent=0 // pred_fallthru
    _
  // Predicated region
  $region14: #{tpu_custom_call.1} parent=0 // pred_check
    _
  $region15: #{tpu_custom_call.1} parent=0 // pred_check_branch
    %19 = sbr.rel (0) target = $region17
  $region16: #{tpu_custom_call.1} parent=0 // pred_region
    _
  $region17: #{tpu_custom_call.1} parent=0 // pred_fallthru
    _
  // Predicated region
  $region18: #{tpu_custom_call.1} parent=0 // pred_check
    _
  $region19: #{tpu_custom_call.1} parent=0 // pred_check_branch
    %21 = sbr.rel (0) target = $region21
  $region20: #{tpu_custom_call.1} parent=0 // pred_region
    _
  $region21: #{tpu_custom_call.1} parent=0 // pred_fallthru
    _
  %v22 = vld [vmem:[%s0] sm:$0xff]
  %v23 = vld [vmem:[%s1] sm:$0xff]
  %v24 = vld [vmem:[%s1 + $0x8] sm:$0xff]
  %v25 = vld [vmem:[%s1 + $0x10] sm:$0xff]
  %v26 = vld [vmem:[%s1 + $0x18] sm:$0xff]
  %v27 = vld [vmem:[%s2] sm:$0x1]
  %v28 = vld [vmem:[%s3] sm:$0x1]
  %v29 = vld [vmem:[#allocation2] sm:$0x1]
  %v31 = vperm.slane %v27, 0
  %vm33 = vcmask 261120
  %v35 = vsel %vm33, %v22, 0
  %37 = vmatpush.msra.mxu0 0.0
  %38 = vmatpush.msra.mxu0 0.0
  %39 = vmatpush.msra.mxu0 0.0
  %40 = vmatpush.msra.mxu0 0.0
  %41 = vmatpush.msra.mxu0 0.0
  %42 = vmatpush.msra.mxu0 0.0
  %43 = vmatpush.msra.mxu0 0.0
  %44 = vmatpush.msra.mxu0 0.0
  %45 = vmatpush.msra.mxu0 0.0
  %46 = vmatpush.msra.mxu0 0.0
  %47 = vmatpush.msra.mxu0 0.0
  %48 = vmatpush.msra.mxu0 0.0
  %49 = vmatpush.msra.mxu0 %v26
  %50 = vmatpush.msra.mxu0 %v25
  %51 = vmatpush.msra.mxu0 %v24
  %52 = vmatpush.msra.mxu0 %v23
  %53 = vmatmul.f32.gmra.mxu0 %v35
  %v54 = vpop.f32.mrf.mxu0
  %v55 = vadd.f32 %v31, %v54
  %56 = vdwg.mxu0
  %v57 = vxor.u32 %v55, 2147483648
  %v58 = vmul.f32 %v57, 1.442695
  %v59 = vpow.pop %v58
  %v60 = vadd.f32 %v59, 1.0
  %v61 = vrcp.pop %v60
  %v62 = vmul.f32 %v60, %v61
  %v63 = vsub.f32 1.0, %v62
  %v64 = vmul.f32 %v61, %v63
  %v65 = vadd.f32 %v61, %v64
  %vm66 = vweird.f32 %v60
  %vm67 = vweird.f32 %v61
  %vm68 = vmor %vm66, %vm67
  %v69 = vsel %vm68, %v61, %v65
  %v70 = vand.u32 2147483647, %v60
  %vm71 = vcmp.eq.f32.partialorder %v70, 8.507059e+37
  %v72 = vand.u32 %v60, 2147483648
  %v73 = vor.u32 1.1754944e-38, %v72
  %v74 = vsel %vm71, %v73, %v69
  %v75 = vmul.f32 1.0, %v74
  %v77 = vperm.slane %v28, 0
  %v79 = vmul.f32 %v75, %v77
  %vm80 = vcmask 23552
  %v81 = vsel %vm80, %v79, 0.0
  %82 = vadd.xlane.f32.xlu0 %v81
  %v83 = vpop.xlane.xlu0 %82
  %v85 = vperm.slane %v29, 0
  %v87 = vadd.f32 %v83, %v85
  %v88 = vxor.u32 %v87, 2147483648
  %v89 = vmul.f32 %v88, 1.442695
  %v90 = vpow.pop %v89
  %v91 = vadd.f32 %v90, 1.0
  %v92 = vrcp.pop %v91
  %v93 = vmul.f32 %v91, %v92
  %v94 = vsub.f32 1.0, %v93
  %v95 = vmul.f32 %v92, %v94
  %v96 = vadd.f32 %v92, %v95
  %vm97 = vweird.f32 %v91
  %vm98 = vweird.f32 %v92
  %vm99 = vmor %vm97, %vm98
  %v100 = vsel %vm99, %v92, %v96
  %v101 = vand.u32 2147483647, %v91
  %vm102 = vcmp.eq.f32.partialorder %v101, 8.507059e+37
  %v103 = vand.u32 %v91, 2147483648
  %v104 = vor.u32 1.1754944e-38, %v103
  %v105 = vsel %vm102, %v104, %v100
  %v106 = vmul.f32 1.0, %v105
  %vm107 = vcmask 7168
  %108 = vst.msk [vmem:[%s5] sm:$0xff] %vm107, %v106
  // Predicated region
  $region22: #{tpu_custom_call.1} parent=0 // pred_check
    _
  $region23: #{tpu_custom_call.1} parent=0 // pred_check_branch
    %110 = sbr.rel (0) target = $region25
  $region24: #{tpu_custom_call.1} parent=0 // pred_region
    _
  $region25: #{tpu_custom_call.1} parent=0 // pred_fallthru
    _
  // Predicated region
  $region26: #{tpu_custom_call.1} parent=0 // pred_check
    _
  $region27: #{tpu_custom_call.1} parent=0 // pred_check_branch
    %112 = sbr.rel (0) target = $region29
  $region28: #{tpu_custom_call.1} parent=0 // pred_region
    _
  $region29: #{tpu_custom_call.1} parent=0 // pred_fallthru
    _

</llo_original>
